<compile_context>
chip_gen: v5e
topology: v5e:2x2
jax: 0.10.0
libtpu: 0.0.40
codegen_flags: <defaults>
</compile_context>

<pallas_src>
import jax
import jax.numpy as jnp
from jax.experimental import pallas as pl
from jax.experimental.pallas import tpu as pltpu


# ----------------------------------------------------------------------------
# Model configuration (small synthetic sizes consistent with the module)
# ----------------------------------------------------------------------------
CHANNELS = 32        # inner channels
STRIDE = 4           # encoder stride / decoder transpose stride
DIMENSION = 16       # encoder embedding dimension
KERNEL_SIZE = 8      # encoder conv / decoder conv-transpose kernel
CONTEXT_SIZE = 2     # decoder first conv kernel
REWRITE_LAYERS = 1   # 1x1 conv layers in encoder & decoder
LATENT_DIMS = 8      # VAE latent dimension
TIME_DIMS = 15       # unused by forward (kept for signature parity)


def hann_window_sq(n):
    """Periodic Hann window (torch.hann_window default), squared."""
    k = jnp.arange(n, dtype=jnp.float32)
    win = 0.5 * (1.0 - jnp.cos(2.0 * jnp.pi * k / n))
    return win * win


def build_params(key):
    """Deterministic synthetic parameters with shapes matching the PyTorch module."""
    p = {}
    keys = jax.random.split(key, 32)
    ki = iter(range(32))

    def rnd(shape, fan_in):
        return (jax.random.normal(keys[next(ki)], shape, jnp.float32)
                / jnp.sqrt(jnp.float32(fan_in)))

    C, D, Dl, K, ctx = CHANNELS, DIMENSION, LATENT_DIMS, KERNEL_SIZE, CONTEXT_SIZE
    win = hann_window_sq(K)

    # --- Encoder ---
    # WindowedConv1d(Conv1d(1, C, K, stride)): weight (C, 1, K) * window(K)
    w_enc0 = rnd((C, 1, K), K) * win[None, None, :]
    p["enc0_w"] = jnp.transpose(w_enc0[:, 0, :], (1, 0))         # (K, C)
    p["enc0_b"] = rnd((1, C), K)
    for i in range(REWRITE_LAYERS):                              # Conv1d(C, C, 1)
        p[f"enc_rw{i}_w"] = jnp.transpose(rnd((C, C), C))
        p[f"enc_rw{i}_b"] = rnd((1, C), C)
    p["enc_out_w"] = jnp.transpose(rnd((D, C), C))               # (C, D)
    p["enc_out_b"] = rnd((1, D), C)

    # --- mu / log_var heads (Conv1d(D, latent, 1)) fused into ONE matmul ---
    mu_w = jnp.transpose(rnd((Dl, D), D))                        # (D, Dl)
    lv_w = jnp.transpose(rnd((Dl, D), D))
    p["mulv_w"] = jnp.concatenate([mu_w, lv_w], axis=1)          # (D, 2*Dl)
    p["mulv_b"] = jnp.concatenate([rnd((1, Dl), D), rnd((1, Dl), D)], axis=1)

    # --- Decoder ---
    # Conv1d(latent, C, context_size): weight (C, Dl, ctx)
    w_dec0 = rnd((C, Dl, ctx), Dl * ctx)
    # flatten so that column index = k * Dl + d (matches in-kernel packing)
    p["dec0_w"] = jnp.transpose(w_dec0, (2, 1, 0)).reshape(ctx * Dl, C)
    p["dec0_b"] = rnd((1, C), Dl * ctx)
    for i in range(REWRITE_LAYERS):                              # Conv1d(C, C, 1)
        p[f"dec_rw{i}_w"] = jnp.transpose(rnd((C, C), C))
        p[f"dec_rw{i}_b"] = rnd((1, C), C)
    # WindowedConvTranpose1d(ConvTranspose1d(C, 1, K, stride, padding=K-stride))
    w_tr = rnd((C, 1, K), C) * win[None, None, :]
    p["tr_w"] = w_tr[:, 0, :]                                    # (C, K)
    p["tr_b"] = rnd((1, 1), C)
    return p


# ----------------------------------------------------------------------------
# Forward pass (== ConvolutionalVAE.forward) -- one fused Pallas kernel
# ----------------------------------------------------------------------------
def conv_vae_forward(params, x, eps):
    """x: (B, 1, T) float32 (PyTorch NCL). eps: (B, latent_dims, L_enc) noise.

    Returns (x_tilde (B, T_out), z_tilde (B, latent_dims, L_enc), kl scalar).
    """
    B, _, T = x.shape
    K, S, ctx = KERNEL_SIZE, STRIDE, CONTEXT_SIZE
    Dl, R = LATENT_DIMS, REWRITE_LAYERS
    assert K % S == 0, "in-kernel overlap-add assumes stride divides kernel_size"
    L = (T - K) // S + 1            # encoder output length
    Lo = L - ctx + 1                # decoder context-conv output length
    r = K // S                      # overlapping kernel segments per stride
    n_blk = Lo - r + 1              # stride-blocks in the cropped waveform
    inv_scale = 1.0 / (265.0 * float(B))   # matches "/ 265 / n_batch" in torch ref

    # Encoder im2col framing: pure strided slicing (no gather / scatter).
    # TODO(synk): fold into the kernel with pl.ds strided reads if T scales.
    x2d = x[:, 0, :].astype(jnp.float32)
    patches = jnp.stack(
        [x2d[:, k:k + (L - 1) * S + 1:S] for k in range(K)], axis=-1
    ).reshape(B * L, K)
    eps_flat = jnp.transpose(eps, (0, 2, 1)).reshape(B * L, Dl).astype(jnp.float32)

    inputs = [patches, eps_flat, params["enc0_w"], params["enc0_b"]]
    for i in range(R):
        inputs += [params[f"enc_rw{i}_w"], params[f"enc_rw{i}_b"]]
    inputs += [params["enc_out_w"], params["enc_out_b"],
               params["mulv_w"], params["mulv_b"],
               params["dec0_w"], params["dec0_b"]]
    for i in range(R):
        inputs += [params[f"dec_rw{i}_w"], params[f"dec_rw{i}_b"]]
    inputs += [params["tr_w"], params["tr_b"]]
    n_in = len(inputs)

    def kernel(*refs):
        in_refs, (z_ref, wav_ref, kl_ref) = refs[:n_in], refs[n_in:]
        it = iter(in_refs)
        patches_v = next(it)[...]                # (B*L, K)
        eps_v = next(it)[...]                    # (B*L, Dl)

        def dense(xv, relu):
            w = next(it)[...]
            b = next(it)[...]                    # (1, N) -> single broadcast
            y = jnp.dot(xv, w, preferred_element_type=jnp.float32) + b
            return jnp.maximum(y, 0.0) if relu else y

        # -------- encoder --------
        h = dense(patches_v, relu=True)          # strided K-tap conv
        for _ in range(R):
            h = dense(h, relu=True)              # 1x1 rewrites
        h = dense(h, relu=False)                 # embedding (B*L, D)

        # fused mu / log_var head, split along lanes
        mulv = dense(h, relu=False)              # (B*L, 2*Dl)
        mu, lv = mulv[:, :Dl], mulv[:, Dl:]

        # -------- latent: reparameterization + KL (scalar -> SMEM) --------
        z = jnp.exp(0.5 * lv) * eps_v + mu       # == sqrt(exp(lv)) * eps + mu
        z_ref[...] = z
        kl_ref[0, 0] = -0.5 * jnp.sum(1.0 + lv - mu * mu - jnp.exp(lv)) * inv_scale

        # -------- decoder --------
        # context conv: concat ctx adjacent embeddings per output step
        cols = []
        for k in range(ctx):
            sel = [z[b * L + k:b * L + k + Lo, :] for b in range(B)]
            cols.append(sel[0] if B == 1 else jnp.concatenate(sel, axis=0))
        zp = cols[0] if ctx == 1 else jnp.concatenate(cols, axis=-1)   # (B*Lo, ctx*Dl)

        d = dense(zp, relu=True)
        for _ in range(R):
            d = dense(d, relu=True)

        # windowed ConvTranspose1d: per-step kernel contributions, then the
        # overlap-add + padding crop expressed as r = K//S shifted row sums.
        tr_w = next(it)[...]                     # (C, K)
        tr_b = next(it)[...]                     # (1, 1)
        contrib = jnp.dot(d, tr_w, preferred_element_type=jnp.float32)  # (B*Lo, K)
        acc = None
        for j in range(r):
            part = contrib[:, j * S:(j + 1) * S]           # kernel taps [j*S, (j+1)*S)
            off = r - 1 - j
            sel = [part[b * Lo + off:b * Lo + off + n_blk, :] for b in range(B)]
            selc = sel[0] if B == 1 else jnp.concatenate(sel, axis=0)
            acc = selc if acc is None else acc + selc
        wav_ref[...] = acc + tr_b                # (B*n_blk, S)

    z_flat, wav_blocks, kl = pl.pallas_call(
        kernel,
        out_shape=(
            jax.ShapeDtypeStruct((B * L, Dl), jnp.float32),
            jax.ShapeDtypeStruct((B * n_blk, S), jnp.float32),
            jax.ShapeDtypeStruct((1, 1), jnp.float32),
        ),
        grid=(1,),
        in_specs=[pl.BlockSpec(a.shape, lambda i: (0, 0)) for a in inputs],
        out_specs=(
            pl.BlockSpec((B * L, Dl), lambda i: (0, 0)),
            pl.BlockSpec((B * n_blk, S), lambda i: (0, 0)),
            pl.BlockSpec(memory_space=pltpu.MemorySpace.SMEM),   # KL scalar
        ),
        compiler_params=pltpu.CompilerParams(
            dimension_semantics=("arbitrary",)),
    )(*inputs)

    # Output-layout glue (pure reshape / transpose in plain JAX).
    wav = wav_blocks.reshape(B, n_blk * S)                         # (B, T_out)
    z_tilde = jnp.transpose(z_flat.reshape(B, L, Dl), (0, 2, 1))   # (B, Dl, L) NCL
    return wav, z_tilde, kl[0, 0]


# ----------------------------------------------------------------------------
# Plain-JAX reference of the same forward (for the correctness check)
# ----------------------------------------------------------------------------
def conv_vae_reference(params, x, eps):
    B, _, T = x.shape
    K, S, ctx, Dl = KERNEL_SIZE, STRIDE, CONTEXT_SIZE, LATENT_DIMS
    L = (T - K) // S + 1
    idx = jnp.arange(L)[:, None] * S + jnp.arange(K)[None, :]
    patches = x[:, 0, :][:, idx].reshape(B * L, K)
    h = jnp.maximum(patches @ params["enc0_w"] + params["enc0_b"], 0.0)
    for i in range(REWRITE_LAYERS):
        h = jnp.maximum(h @ params[f"enc_rw{i}_w"] + params[f"enc_rw{i}_b"], 0.0)
    h = h @ params["enc_out_w"] + params["enc_out_b"]
    mulv = h @ params["mulv_w"] + params["mulv_b"]
    mu, lv = mulv[:, :Dl], mulv[:, Dl:]
    eps_flat = jnp.transpose(eps, (0, 2, 1)).reshape(B * L, Dl)
    z = jnp.sqrt(jnp.exp(lv)) * eps_flat + mu
    kl = -0.5 * jnp.sum(1.0 + lv - mu * mu - jnp.exp(lv)) / 265.0 / B
    zz = z.reshape(B, L, Dl)
    Lo = L - ctx + 1
    idx2 = jnp.arange(Lo)[:, None] + jnp.arange(ctx)[None, :]
    zp = zz[:, idx2, :].reshape(B * Lo, ctx * Dl)
    d = jnp.maximum(zp @ params["dec0_w"] + params["dec0_b"], 0.0)
    for i in range(REWRITE_LAYERS):
        d = jnp.maximum(d @ params[f"dec_rw{i}_w"] + params[f"dec_rw{i}_b"], 0.0)
    contrib = (d @ params["tr_w"]).reshape(B, Lo, K)
    full_len = (Lo - 1) * S + K
    tidx = jnp.arange(Lo)[:, None] * S + jnp.arange(K)[None, :]
    full = jnp.zeros((B, full_len), jnp.float32).at[:, tidx].add(contrib)
    pad = K - S
    out_len = (Lo + 1) * S - K
    wav = full[:, pad:pad + out_len] + params["tr_b"][0, 0]
    return wav, jnp.transpose(zz, (0, 2, 1)), kl


# ----------------------------------------------------------------------------
if __name__ == "__main__":
    B, T = 2, 64
    L_enc = (T - KERNEL_SIZE) // STRIDE + 1   # 15

    key = jax.random.PRNGKey(0)
    kx, keps = jax.random.split(key)
    x = jax.random.normal(kx, (B, 1, T), jnp.float32)
    # torch.randn_like(mu) replaced by a deterministic external noise input.
    eps = jax.random.normal(keps, (B, LATENT_DIMS, L_enc), jnp.float32)
    params = build_params(jax.random.PRNGKey(1))

    fwd = jax.jit(conv_vae_forward)
    x_tilde, z_tilde, z_loss = fwd(params, x, eps)
    jax.block_until_ready((x_tilde, z_tilde, z_loss))

    assert x_tilde.shape == (B, (L_enc - CONTEXT_SIZE + 2) * STRIDE - KERNEL_SIZE)
    assert z_tilde.shape == (B, LATENT_DIMS, L_enc)
    assert z_loss.shape == ()

    # Correctness check vs plain-JAX reference (loose tol: MXU f32 multi-pass
    # matmuls vs XLA default-precision matmuls).
    xr, zr, kr = jax.jit(conv_vae_reference)(params, x, eps)
    assert bool(jnp.allclose(x_tilde, xr, rtol=2e-2, atol=2e-2)), "wav mismatch"
    assert bool(jnp.allclose(z_tilde, zr, rtol=2e-2, atol=2e-2)), "z mismatch"
    assert bool(jnp.allclose(z_loss, kr, rtol=2e-2, atol=2e-2)), "kl mismatch"

    print("KERNEL_OK")
</pallas_src>

<mosaic_0001>
module attributes {stable_mosaic.version = 11 : i64} {
  func.func @kernel(%arg0: i32, %arg1: memref<30x8xf32, #tpu.memory_space<vmem>>, %arg2: memref<30x8xf32, #tpu.memory_space<vmem>>, %arg3: memref<8x32xf32, #tpu.memory_space<vmem>>, %arg4: memref<1x32xf32, #tpu.memory_space<vmem>>, %arg5: memref<32x32xf32, #tpu.memory_space<vmem>>, %arg6: memref<1x32xf32, #tpu.memory_space<vmem>>, %arg7: memref<32x16xf32, #tpu.memory_space<vmem>>, %arg8: memref<1x16xf32, #tpu.memory_space<vmem>>, %arg9: memref<16x16xf32, #tpu.memory_space<vmem>>, %arg10: memref<1x16xf32, #tpu.memory_space<vmem>>, %arg11: memref<16x32xf32, #tpu.memory_space<vmem>>, %arg12: memref<1x32xf32, #tpu.memory_space<vmem>>, %arg13: memref<32x32xf32, #tpu.memory_space<vmem>>, %arg14: memref<1x32xf32, #tpu.memory_space<vmem>>, %arg15: memref<32x8xf32, #tpu.memory_space<vmem>>, %arg16: memref<1x1xf32, #tpu.memory_space<vmem>>, %arg17: memref<30x8xf32, #tpu.memory_space<vmem>>, %arg18: memref<26x4xf32, #tpu.memory_space<vmem>>, %arg19: memref<1x1xf32, #tpu.memory_space<smem>>) attributes {dimension_semantics = [#tpu.dimension_semantics<arbitrary>], iteration_bounds = array<i64: 1>, scalar_prefetch = 0 : i64, scratch_operands = 0 : i64, tpu.core_type = #tpu.core_type<tc>, window_params = [{pipeline_mode = #tpu.pipeline_mode<synchronous>, transform_indices = @transform_0, window_bounds = array<i64: 30, 8>}, {pipeline_mode = #tpu.pipeline_mode<synchronous>, transform_indices = @transform_1, window_bounds = array<i64: 30, 8>}, {pipeline_mode = #tpu.pipeline_mode<synchronous>, transform_indices = @transform_2, window_bounds = array<i64: 8, 32>}, {pipeline_mode = #tpu.pipeline_mode<synchronous>, transform_indices = @transform_3, window_bounds = array<i64: 1, 32>}, {pipeline_mode = #tpu.pipeline_mode<synchronous>, transform_indices = @transform_4, window_bounds = array<i64: 32, 32>}, {pipeline_mode = #tpu.pipeline_mode<synchronous>, transform_indices = @transform_5, window_bounds = array<i64: 1, 32>}, {pipeline_mode = #tpu.pipeline_mode<synchronous>, transform_indices = @transform_6, window_bounds = array<i64: 32, 16>}, {pipeline_mode = #tpu.pipeline_mode<synchronous>, transform_indices = @transform_7, window_bounds = array<i64: 1, 16>}, {pipeline_mode = #tpu.pipeline_mode<synchronous>, transform_indices = @transform_8, window_bounds = array<i64: 16, 16>}, {pipeline_mode = #tpu.pipeline_mode<synchronous>, transform_indices = @transform_9, window_bounds = array<i64: 1, 16>}, {pipeline_mode = #tpu.pipeline_mode<synchronous>, transform_indices = @transform_10, window_bounds = array<i64: 16, 32>}, {pipeline_mode = #tpu.pipeline_mode<synchronous>, transform_indices = @transform_11, window_bounds = array<i64: 1, 32>}, {pipeline_mode = #tpu.pipeline_mode<synchronous>, transform_indices = @transform_12, window_bounds = array<i64: 32, 32>}, {pipeline_mode = #tpu.pipeline_mode<synchronous>, transform_indices = @transform_13, window_bounds = array<i64: 1, 32>}, {pipeline_mode = #tpu.pipeline_mode<synchronous>, transform_indices = @transform_14, window_bounds = array<i64: 32, 8>}, {pipeline_mode = #tpu.pipeline_mode<synchronous>, transform_indices = @transform_15, window_bounds = array<i64: 1, 1>}, {pipeline_mode = #tpu.pipeline_mode<synchronous>, transform_indices = @transform_16, window_bounds = array<i64: 30, 8>}, {pipeline_mode = #tpu.pipeline_mode<synchronous>, transform_indices = @transform_17, window_bounds = array<i64: 26, 4>}, {transform_indices = @transform_18, window_bounds = array<i64: 1, 1>}]} {
    %c0 = arith.constant 0 : index
    %c0_0 = arith.constant 0 : index
    %0 = vector.load %arg1[%c0, %c0_0] : memref<30x8xf32, #tpu.memory_space<vmem>>, vector<30x8xf32>
    %c0_1 = arith.constant 0 : index
    %c0_2 = arith.constant 0 : index
    %1 = vector.load %arg2[%c0_1, %c0_2] : memref<30x8xf32, #tpu.memory_space<vmem>>, vector<30x8xf32>
    %c0_3 = arith.constant 0 : index
    %c0_4 = arith.constant 0 : index
    %2 = vector.load %arg3[%c0_3, %c0_4] : memref<8x32xf32, #tpu.memory_space<vmem>>, vector<8x32xf32>
    %c0_5 = arith.constant 0 : index
    %c0_6 = arith.constant 0 : index
    %3 = vector.load %arg4[%c0_5, %c0_6] : memref<1x32xf32, #tpu.memory_space<vmem>>, vector<1x32xf32>
    %cst = arith.constant dense<0.000000e+00> : vector<30x32xf32>
    %4 = tpu.matmul %0, %2, %cst {dimension_numbers = #tpu.dot_dimension_numbers<[1], [0], [0], [1], [0, 0, 1, 1], [], []>} : vector<30x8xf32>, vector<8x32xf32>, vector<30x32xf32> -> vector<30x32xf32>
    %5 = vector.broadcast %3 : vector<1x32xf32> to vector<30x32xf32>
    %6 = arith.addf %4, %5 : vector<30x32xf32>
    %cst_7 = arith.constant 0.000000e+00 : f32
    %7 = vector.broadcast %cst_7 : f32 to vector<30x32xf32>
    %8 = arith.maximumf %6, %7 : vector<30x32xf32>
    %c0_8 = arith.constant 0 : index
    %c0_9 = arith.constant 0 : index
    %9 = vector.load %arg5[%c0_8, %c0_9] : memref<32x32xf32, #tpu.memory_space<vmem>>, vector<32x32xf32>
    %c0_10 = arith.constant 0 : index
    %c0_11 = arith.constant 0 : index
    %10 = vector.load %arg6[%c0_10, %c0_11] : memref<1x32xf32, #tpu.memory_space<vmem>>, vector<1x32xf32>
    %cst_12 = arith.constant dense<0.000000e+00> : vector<30x32xf32>
    %11 = tpu.matmul %8, %9, %cst_12 {dimension_numbers = #tpu.dot_dimension_numbers<[1], [0], [0], [1], [0, 0, 1, 1], [], []>} : vector<30x32xf32>, vector<32x32xf32>, vector<30x32xf32> -> vector<30x32xf32>
    %12 = vector.broadcast %10 : vector<1x32xf32> to vector<30x32xf32>
    %13 = arith.addf %11, %12 : vector<30x32xf32>
    %cst_13 = arith.constant 0.000000e+00 : f32
    %14 = vector.broadcast %cst_13 : f32 to vector<30x32xf32>
    %15 = arith.maximumf %13, %14 : vector<30x32xf32>
    %c0_14 = arith.constant 0 : index
    %c0_15 = arith.constant 0 : index
    %16 = vector.load %arg7[%c0_14, %c0_15] : memref<32x16xf32, #tpu.memory_space<vmem>>, vector<32x16xf32>
    %c0_16 = arith.constant 0 : index
    %c0_17 = arith.constant 0 : index
    %17 = vector.load %arg8[%c0_16, %c0_17] : memref<1x16xf32, #tpu.memory_space<vmem>>, vector<1x16xf32>
    %cst_18 = arith.constant dense<0.000000e+00> : vector<30x16xf32>
    %18 = tpu.matmul %15, %16, %cst_18 {dimension_numbers = #tpu.dot_dimension_numbers<[1], [0], [0], [1], [0, 0, 1, 1], [], []>} : vector<30x32xf32>, vector<32x16xf32>, vector<30x16xf32> -> vector<30x16xf32>
    %19 = vector.broadcast %17 : vector<1x16xf32> to vector<30x16xf32>
    %20 = arith.addf %18, %19 : vector<30x16xf32>
    %c0_19 = arith.constant 0 : index
    %c0_20 = arith.constant 0 : index
    %21 = vector.load %arg9[%c0_19, %c0_20] : memref<16x16xf32, #tpu.memory_space<vmem>>, vector<16x16xf32>
    %c0_21 = arith.constant 0 : index
    %c0_22 = arith.constant 0 : index
    %22 = vector.load %arg10[%c0_21, %c0_22] : memref<1x16xf32, #tpu.memory_space<vmem>>, vector<1x16xf32>
    %cst_23 = arith.constant dense<0.000000e+00> : vector<30x16xf32>
    %23 = tpu.matmul %20, %21, %cst_23 {dimension_numbers = #tpu.dot_dimension_numbers<[1], [0], [0], [1], [0, 0, 1, 1], [], []>} : vector<30x16xf32>, vector<16x16xf32>, vector<30x16xf32> -> vector<30x16xf32>
    %24 = vector.broadcast %22 : vector<1x16xf32> to vector<30x16xf32>
    %25 = arith.addf %23, %24 : vector<30x16xf32>
    %26 = vector.extract_strided_slice %25 {offsets = [0, 0], sizes = [30, 8], strides = [1, 1]} : vector<30x16xf32> to vector<30x8xf32>
    %27 = vector.extract_strided_slice %25 {offsets = [0, 8], sizes = [30, 8], strides = [1, 1]} : vector<30x16xf32> to vector<30x8xf32>
    %cst_24 = arith.constant 5.000000e-01 : f32
    %28 = vector.broadcast %cst_24 : f32 to vector<30x8xf32>
    %29 = arith.mulf %28, %27 : vector<30x8xf32>
    %30 = math.exp %29 : vector<30x8xf32>
    %31 = arith.mulf %30, %1 : vector<30x8xf32>
    %32 = arith.addf %31, %26 : vector<30x8xf32>
    %c0_25 = arith.constant 0 : index
    %c0_26 = arith.constant 0 : index
    %33 = vector.load %arg17[%c0_25, %c0_26] : memref<30x8xf32, #tpu.memory_space<vmem>>, vector<30x8xf32>
    tpu.vector_store %arg17[%c0_25, %c0_26], %32 {strides = array<i32>} : memref<30x8xf32, #tpu.memory_space<vmem>>, vector<30x8xf32>,
    %cst_27 = arith.constant 1.000000e+00 : f32
    %34 = vector.broadcast %cst_27 : f32 to vector<30x8xf32>
    %35 = arith.addf %34, %27 : vector<30x8xf32>
    %36 = arith.mulf %26, %26 : vector<30x8xf32>
    %37 = arith.subf %35, %36 : vector<30x8xf32>
    %38 = math.exp %27 : vector<30x8xf32>
    %39 = arith.subf %37, %38 : vector<30x8xf32>
    %40 = vector.shape_cast %39 : vector<30x8xf32> to vector<1x30x8xf32>
    %cst_28 = arith.constant dense<0.000000e+00> : vector<1xf32>
    %41 = vector.multi_reduction <add>, %40, %cst_28 [1, 2] : vector<1x30x8xf32> to vector<1xf32>
    %42 = vector.shape_cast %41 : vector<1xf32> to vector<1x1x1xf32>
    %43 = vector.extract %42[0, 0, 0] : f32 from vector<1x1x1xf32>
    %cst_29 = arith.constant -5.000000e-01 : f32
    %44 = arith.mulf %cst_29, %43 : f32
    %cst_30 = arith.constant 0.00188679248 : f32
    %45 = arith.mulf %44, %cst_30 : f32
    %c0_31 = arith.constant 0 : index
    %c0_32 = arith.constant 0 : index
    %46 = memref.load %arg19[%c0_31, %c0_32] : memref<1x1xf32, #tpu.memory_space<smem>>
    memref.store %45, %arg19[%c0_31, %c0_32] : memref<1x1xf32, #tpu.memory_space<smem>>
    %47 = vector.extract_strided_slice %32 {offsets = [0, 0], sizes = [14, 8], strides = [1, 1]} : vector<30x8xf32> to vector<14x8xf32>
    %48 = vector.extract_strided_slice %32 {offsets = [15, 0], sizes = [14, 8], strides = [1, 1]} : vector<30x8xf32> to vector<14x8xf32>
    %49 = tpu.concatenate %47, %48 in 0 : vector<14x8xf32>, vector<14x8xf32> -> vector<28x8xf32>
    %50 = vector.extract_strided_slice %32 {offsets = [1, 0], sizes = [14, 8], strides = [1, 1]} : vector<30x8xf32> to vector<14x8xf32>
    %51 = vector.extract_strided_slice %32 {offsets = [16, 0], sizes = [14, 8], strides = [1, 1]} : vector<30x8xf32> to vector<14x8xf32>
    %52 = tpu.concatenate %50, %51 in 0 : vector<14x8xf32>, vector<14x8xf32> -> vector<28x8xf32>
    %53 = tpu.concatenate %49, %52 in 1 : vector<28x8xf32>, vector<28x8xf32> -> vector<28x16xf32>
    %c0_33 = arith.constant 0 : index
    %c0_34 = arith.constant 0 : index
    %54 = vector.load %arg11[%c0_33, %c0_34] : memref<16x32xf32, #tpu.memory_space<vmem>>, vector<16x32xf32>
    %c0_35 = arith.constant 0 : index
    %c0_36 = arith.constant 0 : index
    %55 = vector.load %arg12[%c0_35, %c0_36] : memref<1x32xf32, #tpu.memory_space<vmem>>, vector<1x32xf32>
    %cst_37 = arith.constant dense<0.000000e+00> : vector<28x32xf32>
    %56 = tpu.matmul %53, %54, %cst_37 {dimension_numbers = #tpu.dot_dimension_numbers<[1], [0], [0], [1], [0, 0, 1, 1], [], []>} : vector<28x16xf32>, vector<16x32xf32>, vector<28x32xf32> -> vector<28x32xf32>
    %57 = vector.broadcast %55 : vector<1x32xf32> to vector<28x32xf32>
    %58 = arith.addf %56, %57 : vector<28x32xf32>
    %cst_38 = arith.constant 0.000000e+00 : f32
    %59 = vector.broadcast %cst_38 : f32 to vector<28x32xf32>
    %60 = arith.maximumf %58, %59 : vector<28x32xf32>
    %c0_39 = arith.constant 0 : index
    %c0_40 = arith.constant 0 : index
    %61 = vector.load %arg13[%c0_39, %c0_40] : memref<32x32xf32, #tpu.memory_space<vmem>>, vector<32x32xf32>
    %c0_41 = arith.constant 0 : index
    %c0_42 = arith.constant 0 : index
    %62 = vector.load %arg14[%c0_41, %c0_42] : memref<1x32xf32, #tpu.memory_space<vmem>>, vector<1x32xf32>
    %cst_43 = arith.constant dense<0.000000e+00> : vector<28x32xf32>
    %63 = tpu.matmul %60, %61, %cst_43 {dimension_numbers = #tpu.dot_dimension_numbers<[1], [0], [0], [1], [0, 0, 1, 1], [], []>} : vector<28x32xf32>, vector<32x32xf32>, vector<28x32xf32> -> vector<28x32xf32>
    %64 = vector.broadcast %62 : vector<1x32xf32> to vector<28x32xf32>
    %65 = arith.addf %63, %64 : vector<28x32xf32>
    %cst_44 = arith.constant 0.000000e+00 : f32
    %66 = vector.broadcast %cst_44 : f32 to vector<28x32xf32>
    %67 = arith.maximumf %65, %66 : vector<28x32xf32>
    %c0_45 = arith.constant 0 : index
    %c0_46 = arith.constant 0 : index
    %68 = vector.load %arg15[%c0_45, %c0_46] : memref<32x8xf32, #tpu.memory_space<vmem>>, vector<32x8xf32>
    %c0_47 = arith.constant 0 : index
    %c0_48 = arith.constant 0 : index
    %69 = vector.load %arg16[%c0_47, %c0_48] : memref<1x1xf32, #tpu.memory_space<vmem>>, vector<1x1xf32>
    %cst_49 = arith.constant dense<0.000000e+00> : vector<28x8xf32>
    %70 = tpu.matmul %67, %68, %cst_49 {dimension_numbers = #tpu.dot_dimension_numbers<[1], [0], [0], [1], [0, 0, 1, 1], [], []>} : vector<28x32xf32>, vector<32x8xf32>, vector<28x8xf32> -> vector<28x8xf32>
    %71 = vector.extract_strided_slice %70 {offsets = [0, 0], sizes = [28, 4], strides = [1, 1]} : vector<28x8xf32> to vector<28x4xf32>
    %72 = vector.extract_strided_slice %71 {offsets = [1, 0], sizes = [13, 4], strides = [1, 1]} : vector<28x4xf32> to vector<13x4xf32>
    %73 = vector.extract_strided_slice %71 {offsets = [15, 0], sizes = [13, 4], strides = [1, 1]} : vector<28x4xf32> to vector<13x4xf32>
    %74 = tpu.concatenate %72, %73 in 0 : vector<13x4xf32>, vector<13x4xf32> -> vector<26x4xf32>
    %75 = vector.extract_strided_slice %70 {offsets = [0, 4], sizes = [28, 4], strides = [1, 1]} : vector<28x8xf32> to vector<28x4xf32>
    %76 = vector.extract_strided_slice %75 {offsets = [0, 0], sizes = [13, 4], strides = [1, 1]} : vector<28x4xf32> to vector<13x4xf32>
    %77 = vector.extract_strided_slice %75 {offsets = [14, 0], sizes = [13, 4], strides = [1, 1]} : vector<28x4xf32> to vector<13x4xf32>
    %78 = tpu.concatenate %76, %77 in 0 : vector<13x4xf32>, vector<13x4xf32> -> vector<26x4xf32>
    %79 = arith.addf %74, %78 : vector<26x4xf32>
    %80 = vector.broadcast %69 : vector<1x1xf32> to vector<26x4xf32>
    %81 = arith.addf %79, %80 : vector<26x4xf32>
    %c0_50 = arith.constant 0 : index
    %c0_51 = arith.constant 0 : index
    %82 = vector.load %arg18[%c0_50, %c0_51] : memref<26x4xf32, #tpu.memory_space<vmem>>, vector<26x4xf32>
    tpu.vector_store %arg18[%c0_50, %c0_51], %81 {strides = array<i32>} : memref<26x4xf32, #tpu.memory_space<vmem>>, vector<26x4xf32>,
    return
  }
  func.func @transform_0(%arg0: i32) -> (i32, i32) {
    %c0_i32 = arith.constant 0 : i32
    %c0_i32_0 = arith.constant 0 : i32
    %c0_i32_1 = arith.constant 0 : i32
    return %c0_i32, %c0_i32_0 : i32, i32
  }
  func.func @transform_1(%arg0: i32) -> (i32, i32) {
    %c0_i32 = arith.constant 0 : i32
    %c0_i32_0 = arith.constant 0 : i32
    %c0_i32_1 = arith.constant 0 : i32
    return %c0_i32, %c0_i32_0 : i32, i32
  }
  func.func @transform_2(%arg0: i32) -> (i32, i32) {
    %c0_i32 = arith.constant 0 : i32
    %c0_i32_0 = arith.constant 0 : i32
    %c0_i32_1 = arith.constant 0 : i32
    return %c0_i32, %c0_i32_0 : i32, i32
  }
  func.func @transform_3(%arg0: i32) -> (i32, i32) {
    %c0_i32 = arith.constant 0 : i32
    %c0_i32_0 = arith.constant 0 : i32
    %c0_i32_1 = arith.constant 0 : i32
    return %c0_i32, %c0_i32_0 : i32, i32
  }
  func.func @transform_4(%arg0: i32) -> (i32, i32) {
    %c0_i32 = arith.constant 0 : i32
    %c0_i32_0 = arith.constant 0 : i32
    %c0_i32_1 = arith.constant 0 : i32
    return %c0_i32, %c0_i32_0 : i32, i32
  }
  func.func @transform_5(%arg0: i32) -> (i32, i32) {
    %c0_i32 = arith.constant 0 : i32
    %c0_i32_0 = arith.constant 0 : i32
    %c0_i32_1 = arith.constant 0 : i32
    return %c0_i32, %c0_i32_0 : i32, i32
  }
  func.func @transform_6(%arg0: i32) -> (i32, i32) {
    %c0_i32 = arith.constant 0 : i32
    %c0_i32_0 = arith.constant 0 : i32
    %c0_i32_1 = arith.constant 0 : i32
    return %c0_i32, %c0_i32_0 : i32, i32
  }
  func.func @transform_7(%arg0: i32) -> (i32, i32) {
    %c0_i32 = arith.constant 0 : i32
    %c0_i32_0 = arith.constant 0 : i32
    %c0_i32_1 = arith.constant 0 : i32
    return %c0_i32, %c0_i32_0 : i32, i32
  }
  func.func @transform_8(%arg0: i32) -> (i32, i32) {
    %c0_i32 = arith.constant 0 : i32
    %c0_i32_0 = arith.constant 0 : i32
    %c0_i32_1 = arith.constant 0 : i32
    return %c0_i32, %c0_i32_0 : i32, i32
  }
  func.func @transform_9(%arg0: i32) -> (i32, i32) {
    %c0_i32 = arith.constant 0 : i32
    %c0_i32_0 = arith.constant 0 : i32
    %c0_i32_1 = arith.constant 0 : i32
    return %c0_i32, %c0_i32_0 : i32, i32
  }
  func.func @transform_10(%arg0: i32) -> (i32, i32) {
    %c0_i32 = arith.constant 0 : i32
    %c0_i32_0 = arith.constant 0 : i32
    %c0_i32_1 = arith.constant 0 : i32
    return %c0_i32, %c0_i32_0 : i32, i32
  }
  func.func @transform_11(%arg0: i32) -> (i32, i32) {
    %c0_i32 = arith.constant 0 : i32
    %c0_i32_0 = arith.constant 0 : i32
    %c0_i32_1 = arith.constant 0 : i32
    return %c0_i32, %c0_i32_0 : i32, i32
  }
  func.func @transform_12(%arg0: i32) -> (i32, i32) {
    %c0_i32 = arith.constant 0 : i32
    %c0_i32_0 = arith.constant 0 : i32
    %c0_i32_1 = arith.constant 0 : i32
    return %c0_i32, %c0_i32_0 : i32, i32
  }
  func.func @transform_13(%arg0: i32) -> (i32, i32) {
    %c0_i32 = arith.constant 0 : i32
    %c0_i32_0 = arith.constant 0 : i32
    %c0_i32_1 = arith.constant 0 : i32
    return %c0_i32, %c0_i32_0 : i32, i32
  }
  func.func @transform_14(%arg0: i32) -> (i32, i32) {
    %c0_i32 = arith.constant 0 : i32
    %c0_i32_0 = arith.constant 0 : i32
    %c0_i32_1 = arith.constant 0 : i32
    return %c0_i32, %c0_i32_0 : i32, i32
  }
  func.func @transform_15(%arg0: i32) -> (i32, i32) {
    %c0_i32 = arith.constant 0 : i32
    %c0_i32_0 = arith.constant 0 : i32
    %c0_i32_1 = arith.constant 0 : i32
    return %c0_i32, %c0_i32_0 : i32, i32
  }
  func.func @transform_16(%arg0: i32) -> (i32, i32) {
    %c0_i32 = arith.constant 0 : i32
    %c0_i32_0 = arith.constant 0 : i32
    %c0_i32_1 = arith.constant 0 : i32
    return %c0_i32, %c0_i32_0 : i32, i32
  }
  func.func @transform_17(%arg0: i32) -> (i32, i32) {
    %c0_i32 = arith.constant 0 : i32
    %c0_i32_0 = arith.constant 0 : i32
    %c0_i32_1 = arith.constant 0 : i32
    return %c0_i32, %c0_i32_0 : i32, i32
  }
  func.func @transform_18(%arg0: i32) -> (i32, i32) {
    %c0_i32 = arith.constant 0 : i32
    %c0_i32_0 = arith.constant 0 : i32
    %c0_i32_1 = arith.constant 0 : i32
    return %c0_i32, %c0_i32_0 : i32, i32
  }
}

</mosaic_0001>

<llo_original>
// kernel: conv_vae_forward.1
$region0: #{conv_vae_forward.1}
  #allocation0 [shape = 'u32[]', space=smem, size = 0x4, offset = 0x4, fixed_abs, tag = 'smem constant byte address 0x4 - core index']
  #allocation1 [shape = 'u32[72,128]{1,0:T(1,128)}', space=vmem, size = 0x9000, scoped, tag = 'internal scratch']
  #allocation2 [shape = 'f32[1,1]{1,0:T(1,128)S(1)}', space=vmem, size = 0x200, scoped, tag = 'scoped memory for conv_vae_forward.1']
  %s0 = inlined_call_operand.vmem [shape: f32[30,8], index: 0, kind: input, shape index: {}]
  %s1 = inlined_call_operand.vmem [shape: f32[30,8], index: 1, kind: input, shape index: {}]
  %s2 = inlined_call_operand.vmem [shape: f32[8,32], index: 2, kind: input, shape index: {}]
  %s3 = inlined_call_operand.vmem [shape: f32[1,32], index: 3, kind: input, shape index: {}]
  %s4 = inlined_call_operand.vmem [shape: f32[32,32], index: 4, kind: input, shape index: {}]
  %s5 = inlined_call_operand.vmem [shape: f32[1,32], index: 5, kind: input, shape index: {}]
  %s6 = inlined_call_operand.vmem [shape: f32[32,16], index: 6, kind: input, shape index: {}]
  %s7 = inlined_call_operand.vmem [shape: f32[1,16], index: 7, kind: input, shape index: {}]
  %s8 = inlined_call_operand.vmem [shape: f32[16,16], index: 8, kind: input, shape index: {}]
  %s9 = inlined_call_operand.vmem [shape: f32[1,16], index: 9, kind: input, shape index: {}]
  %s10 = inlined_call_operand.vmem [shape: f32[16,32], index: 10, kind: input, shape index: {}]
  %s11 = inlined_call_operand.vmem [shape: f32[1,32], index: 11, kind: input, shape index: {}]
  %s12 = inlined_call_operand.vmem [shape: f32[32,32], index: 12, kind: input, shape index: {}]
  %s13 = inlined_call_operand.vmem [shape: f32[1,32], index: 13, kind: input, shape index: {}]
  %s14 = inlined_call_operand.vmem [shape: f32[32,8], index: 14, kind: input, shape index: {}]
  %s15 = inlined_call_operand.<no memory space> [shape: f32[1,1], index: 15, kind: input, shape index: {}]
  %s16 = inlined_call_operand.vmem [shape: f32[30,8], index: 16, kind: output, shape index: {0}]
  %s17 = inlined_call_operand.vmem [shape: f32[26,4], index: 17, kind: output, shape index: {1}]
  %s18 = inlined_call_operand.hbm [shape: f32[1,1], index: 18, kind: output, shape index: {2}]
  %19 = xla_tuple %s16, %s17, %s18
  %s20 = sld [smem:[#allocation0]]
  $region90: #{conv_vae_forward.1} parent=0
    _
  %s22 = ssub.s32 1, %s20
  %s23 = scalar_select 0, %s22, %s20
  %v24 = vstv %s15
  %25 = vst [vmem:[#allocation2] sm:$0x1] %v24
  $region1: #{conv_vae_forward.1} parent=0
    #allocation3 [shape = 'u8[512]{0}', space=smem, size = 0x200, scoped, tag = 'output window, operand 2, single buffered']
    #allocation4 [shape = 's32[1]{0}', space=sflag, size = 0x4, scoped, tag = 'scoped memory for conv_vae_forward.1']
    %26 = vsyncpa [#allocation4], 0
    // Predicated region
    $region2: #{conv_vae_forward.1} parent=1 // pred_check
      _
    $region3: #{conv_vae_forward.1} parent=1 // pred_check_branch
      %28 = sbr.rel (0) target = $region5
    $region4: #{conv_vae_forward.1} parent=1 // pred_region
      _
    $region5: #{conv_vae_forward.1} parent=1 // pred_fallthru
      _
    // Predicated region
    $region6: #{conv_vae_forward.1} parent=1 // pred_check
      _
    $region7: #{conv_vae_forward.1} parent=1 // pred_check_branch
      %30 = sbr.rel (0) target = $region9
    $region8: #{conv_vae_forward.1} parent=1 // pred_region
      _
    $region9: #{conv_vae_forward.1} parent=1 // pred_fallthru
      _
    // Predicated region
    $region10: #{conv_vae_forward.1} parent=1 // pred_check
      _
    $region11: #{conv_vae_forward.1} parent=1 // pred_check_branch
      %32 = sbr.rel (0) target = $region13
    $region12: #{conv_vae_forward.1} parent=1 // pred_region
      _
    $region13: #{conv_vae_forward.1} parent=1 // pred_fallthru
      _
    // Predicated region
    $region14: #{conv_vae_forward.1} parent=1 // pred_check
      _
    $region15: #{conv_vae_forward.1} parent=1 // pred_check_branch
      %34 = sbr.rel (0) target = $region17
    $region16: #{conv_vae_forward.1} parent=1 // pred_region
      _
    $region17: #{conv_vae_forward.1} parent=1 // pred_fallthru
      _
    // Predicated region
    $region18: #{conv_vae_forward.1} parent=1 // pred_check
      _
    $region19: #{conv_vae_forward.1} parent=1 // pred_check_branch
      %36 = sbr.rel (0) target = $region21
    $region20: #{conv_vae_forward.1} parent=1 // pred_region
      _
    $region21: #{conv_vae_forward.1} parent=1 // pred_fallthru
      _
    // Predicated region
    $region22: #{conv_vae_forward.1} parent=1 // pred_check
      _
    $region23: #{conv_vae_forward.1} parent=1 // pred_check_branch
      %38 = sbr.rel (0) target = $region25
    $region24: #{conv_vae_forward.1} parent=1 // pred_region
      _
    $region25: #{conv_vae_forward.1} parent=1 // pred_fallthru
      _
    // Predicated region
    $region26: #{conv_vae_forward.1} parent=1 // pred_check
      _
    $region27: #{conv_vae_forward.1} parent=1 // pred_check_branch
      %40 = sbr.rel (0) target = $region29
    $region28: #{conv_vae_forward.1} parent=1 // pred_region
      _
    $region29: #{conv_vae_forward.1} parent=1 // pred_fallthru
      _
    // Predicated region
    $region30: #{conv_vae_forward.1} parent=1 // pred_check
      _
    $region31: #{conv_vae_forward.1} parent=1 // pred_check_branch
      %42 = sbr.rel (0) target = $region33
    $region32: #{conv_vae_forward.1} parent=1 // pred_region
      _
    $region33: #{conv_vae_forward.1} parent=1 // pred_fallthru
      _
    // Predicated region
    $region34: #{conv_vae_forward.1} parent=1 // pred_check
      _
    $region35: #{conv_vae_forward.1} parent=1 // pred_check_branch
      %44 = sbr.rel (0) target = $region37
    $region36: #{conv_vae_forward.1} parent=1 // pred_region
      _
    $region37: #{conv_vae_forward.1} parent=1 // pred_fallthru
      _
    // Predicated region
    $region38: #{conv_vae_forward.1} parent=1 // pred_check
      _
    $region39: #{conv_vae_forward.1} parent=1 // pred_check_branch
      %46 = sbr.rel (0) target = $region41
    $region40: #{conv_vae_forward.1} parent=1 // pred_region
      _
    $region41: #{conv_vae_forward.1} parent=1 // pred_fallthru
      _
    // Predicated region
    $region42: #{conv_vae_forward.1} parent=1 // pred_check
      _
    $region43: #{conv_vae_forward.1} parent=1 // pred_check_branch
      %48 = sbr.rel (0) target = $region45
    $region44: #{conv_vae_forward.1} parent=1 // pred_region
      _
    $region45: #{conv_vae_forward.1} parent=1 // pred_fallthru
      _
    // Predicated region
    $region46: #{conv_vae_forward.1} parent=1 // pred_check
      _
    $region47: #{conv_vae_forward.1} parent=1 // pred_check_branch
      %50 = sbr.rel (0) target = $region49
    $region48: #{conv_vae_forward.1} parent=1 // pred_region
      _
    $region49: #{conv_vae_forward.1} parent=1 // pred_fallthru
      _
    // Predicated region
    $region50: #{conv_vae_forward.1} parent=1 // pred_check
      _
    $region51: #{conv_vae_forward.1} parent=1 // pred_check_branch
      %52 = sbr.rel (0) target = $region53
    $region52: #{conv_vae_forward.1} parent=1 // pred_region
      _
    $region53: #{conv_vae_forward.1} parent=1 // pred_fallthru
      _
    // Predicated region
    $region54: #{conv_vae_forward.1} parent=1 // pred_check
      _
    $region55: #{conv_vae_forward.1} parent=1 // pred_check_branch
      %54 = sbr.rel (0) target = $region57
    $region56: #{conv_vae_forward.1} parent=1 // pred_region
      _
    $region57: #{conv_vae_forward.1} parent=1 // pred_fallthru
      _
    // Predicated region
    $region58: #{conv_vae_forward.1} parent=1 // pred_check
      _
    $region59: #{conv_vae_forward.1} parent=1 // pred_check_branch
      %56 = sbr.rel (0) target = $region61
    $region60: #{conv_vae_forward.1} parent=1 // pred_region
      _
    $region61: #{conv_vae_forward.1} parent=1 // pred_fallthru
      _
    // Predicated region
    $region62: #{conv_vae_forward.1} parent=1 // pred_check
      _
    $region63: #{conv_vae_forward.1} parent=1 // pred_check_branch
      %58 = sbr.rel (0) target = $region65
    $region64: #{conv_vae_forward.1} parent=1 // pred_region
      _
    $region65: #{conv_vae_forward.1} parent=1 // pred_fallthru
      _
    %v59 = vld [vmem:[%s0] sm:$0xff]
    %v60 = vld [vmem:[%s0 + $0x8] sm:$0xff]
    %v61 = vld [vmem:[%s0 + $0x10] sm:$0xff]
    %v62 = vld [vmem:[%s0 + $0x18] sm:$0x3f]
    %v63 = vld [vmem:[%s1] sm:$0xff]
    %v64 = vld [vmem:[%s1 + $0x8] sm:$0xff]
    %v65 = vld [vmem:[%s1 + $0x10] sm:$0xff]
    %v66 = vld [vmem:[%s1 + $0x18] sm:$0x3f]
    %v67 = vld [vmem:[%s2] sm:$0xff]
    %v68 = vld [vmem:[%s3] sm:$0x1]
    %v70 = vperm.slane %v68, 0
    %vm72 = vcmask 64512
    %v74 = vsel %vm72, %v59, 0
    %v77 = vsel %vm72, %v60, 0
    %v80 = vsel %vm72, %v61, 0
    %v83 = vsel %vm72, %v62, 0
    %85 = vmatpush.msra.mxu0 0.0
    %86 = vmatpush.msra.mxu0 0.0
    %87 = vmatpush.msra.mxu0 0.0
    %88 = vmatpush.msra.mxu0 0.0
    %89 = vmatpush.msra.mxu0 0.0
    %90 = vmatpush.msra.mxu0 0.0
    %91 = vmatpush.msra.mxu0 0.0
    %92 = vmatpush.msra.mxu0 0.0
    %93 = vmatpush.msra.mxu0 0.0
    %94 = vmatpush.msra.mxu0 0.0
    %95 = vmatpush.msra.mxu0 0.0
    %96 = vmatpush.msra.mxu0 0.0
    %97 = vmatpush.msra.mxu0 0.0
    %98 = vmatpush.msra.mxu0 0.0
    %99 = vmatpush.msra.mxu0 0.0
    %100 = vmatpush.msra.mxu0 %v67
    %101 = vmatmul.f32.gmra.mxu0 %v74
    %v102 = vpop.f32.mrf.mxu0
    %v103 = vadd.f32 %v70, %v102
    %104 = vmatmul.f32.gmra.mxu0 %v77
    %v105 = vpop.f32.mrf.mxu0
    %v106 = vadd.f32 %v70, %v105
    %107 = vmatmul.f32.gmra.mxu0 %v80
    %v108 = vpop.f32.mrf.mxu0
    %v109 = vadd.f32 %v70, %v108
    %110 = vmatmul.f32.gmra.mxu0 %v83
    %v111 = vpop.f32.mrf.mxu0
    %v112 = vadd.f32 %v70, %v111
    %113 = vdwg.mxu0
    %v114 = vmax.f32 %v103, 0.0
    %v115 = vmax.f32 %v106, 0.0
    %v116 = vmax.f32 %v109, 0.0
    %v117 = vmax.f32 %v112, 0.0
    %v118 = vld [vmem:[%s4] sm:$0xff]
    %v119 = vld [vmem:[%s4 + $0x8] sm:$0xff]
    %v120 = vld [vmem:[%s4 + $0x10] sm:$0xff]
    %v121 = vld [vmem:[%s4 + $0x18] sm:$0xff]
    %v122 = vld [vmem:[%s5] sm:$0x1]
    %v124 = vperm.slane %v122, 0
    %vm126 = vcmask 261120
    %v128 = vsel %vm126, %v114, 0
    %v131 = vsel %vm126, %v115, 0
    %v134 = vsel %vm126, %v116, 0
    %v137 = vsel %vm126, %v117, 0
    %139 = vmatpush.msra.mxu0 0.0
    %140 = vmatpush.msra.mxu0 0.0
    %141 = vmatpush.msra.mxu0 0.0
    %142 = vmatpush.msra.mxu0 0.0
    %143 = vmatpush.msra.mxu0 0.0
    %144 = vmatpush.msra.mxu0 0.0
    %145 = vmatpush.msra.mxu0 0.0
    %146 = vmatpush.msra.mxu0 0.0
    %147 = vmatpush.msra.mxu0 0.0
    %148 = vmatpush.msra.mxu0 0.0
    %149 = vmatpush.msra.mxu0 0.0
    %150 = vmatpush.msra.mxu0 0.0
    %151 = vmatpush.msra.mxu0 %v121
    %152 = vmatpush.msra.mxu0 %v120
    %153 = vmatpush.msra.mxu0 %v119
    %154 = vmatpush.msra.mxu0 %v118
    %155 = vmatmul.f32.gmra.mxu0 %v128
    %v156 = vpop.f32.mrf.mxu0
    %v157 = vadd.f32 %v124, %v156
    %158 = vmatmul.f32.gmra.mxu0 %v131
    %v159 = vpop.f32.mrf.mxu0
    %v160 = vadd.f32 %v124, %v159
    %161 = vmatmul.f32.gmra.mxu0 %v134
    %v162 = vpop.f32.mrf.mxu0
    %v163 = vadd.f32 %v124, %v162
    %164 = vmatmul.f32.gmra.mxu0 %v137
    %v165 = vpop.f32.mrf.mxu0
    %v166 = vadd.f32 %v124, %v165
    %167 = vdwg.mxu0
    %v168 = vmax.f32 %v157, 0.0
    %v169 = vmax.f32 %v160, 0.0
    %v170 = vmax.f32 %v163, 0.0
    %v171 = vmax.f32 %v166, 0.0
    %v172 = vld [vmem:[%s6] sm:$0xff]
    %v173 = vld [vmem:[%s6 + $0x8] sm:$0xff]
    %v174 = vld [vmem:[%s6 + $0x10] sm:$0xff]
    %v175 = vld [vmem:[%s6 + $0x18] sm:$0xff]
    %v176 = vld [vmem:[%s7] sm:$0x1]
    %v178 = vperm.slane %v176, 0
    %v181 = vsel %vm126, %v168, 0
    %v184 = vsel %vm126, %v169, 0
    %v187 = vsel %vm126, %v170, 0
    %v190 = vsel %vm126, %v171, 0
    %192 = vmatpush.msra.mxu0 0.0
    %193 = vmatpush.msra.mxu0 0.0
    %194 = vmatpush.msra.mxu0 0.0
    %195 = vmatpush.msra.mxu0 0.0
    %196 = vmatpush.msra.mxu0 0.0
    %197 = vmatpush.msra.mxu0 0.0
    %198 = vmatpush.msra.mxu0 0.0
    %199 = vmatpush.msra.mxu0 0.0
    %200 = vmatpush.msra.mxu0 0.0
    %201 = vmatpush.msra.mxu0 0.0
    %202 = vmatpush.msra.mxu0 0.0
    %203 = vmatpush.msra.mxu0 0.0
    %204 = vmatpush.msra.mxu0 %v175
    %205 = vmatpush.msra.mxu0 %v174
    %206 = vmatpush.msra.mxu0 %v173
    %207 = vmatpush.msra.mxu0 %v172
    %208 = vmatmul.f32.gmra.mxu0 %v181
    %v209 = vpop.f32.mrf.mxu0
    %v210 = vadd.f32 %v178, %v209
    %211 = vmatmul.f32.gmra.mxu0 %v184
    %v212 = vpop.f32.mrf.mxu0
    %v213 = vadd.f32 %v178, %v212
    %214 = vmatmul.f32.gmra.mxu0 %v187
    %v215 = vpop.f32.mrf.mxu0
    %v216 = vadd.f32 %v178, %v215
    %217 = vmatmul.f32.gmra.mxu0 %v190
    %v218 = vpop.f32.mrf.mxu0
    %v219 = vadd.f32 %v178, %v218
    %220 = vdwg.mxu0
    %v221 = vld [vmem:[%s8] sm:$0xff]
    %v222 = vld [vmem:[%s8 + $0x8] sm:$0xff]
    %v223 = vld [vmem:[%s9] sm:$0x1]
    %v225 = vperm.slane %v223, 0
    %vm227 = vcmask 130048
    %v229 = vsel %vm227, %v210, 0
    %v232 = vsel %vm227, %v213, 0
    %v235 = vsel %vm227, %v216, 0
    %v238 = vsel %vm227, %v219, 0
    %240 = vmatpush.msra.mxu0 0.0
    %241 = vmatpush.msra.mxu0 0.0
    %242 = vmatpush.msra.mxu0 0.0
    %243 = vmatpush.msra.mxu0 0.0
    %244 = vmatpush.msra.mxu0 0.0
    %245 = vmatpush.msra.mxu0 0.0
    %246 = vmatpush.msra.mxu0 0.0
    %247 = vmatpush.msra.mxu0 0.0
    %248 = vmatpush.msra.mxu0 0.0
    %249 = vmatpush.msra.mxu0 0.0
    %250 = vmatpush.msra.mxu0 0.0
    %251 = vmatpush.msra.mxu0 0.0
    %252 = vmatpush.msra.mxu0 0.0
    %253 = vmatpush.msra.mxu0 0.0
    %254 = vmatpush.msra.mxu0 %v222
    %255 = vmatpush.msra.mxu0 %v221
    %256 = vmatmul.f32.gmra.mxu0 %v229
    %v257 = vpop.f32.mrf.mxu0
    %v258 = vadd.f32 %v225, %v257
    %259 = vmatmul.f32.gmra.mxu0 %v232
    %v260 = vpop.f32.mrf.mxu0
    %v261 = vadd.f32 %v225, %v260
    %262 = vmatmul.f32.gmra.mxu0 %v235
    %v263 = vpop.f32.mrf.mxu0
    %v264 = vadd.f32 %v225, %v263
    %265 = vmatmul.f32.gmra.mxu0 %v238
    %v266 = vpop.f32.mrf.mxu0
    %v267 = vadd.f32 %v225, %v266
    %268 = vdwg.mxu0
    %v269 = vmul.f32 %v258, 0.5
    %v270 = vmul.f32 %v261, 0.5
    %v271 = vmul.f32 %v264, 0.5
    %v272 = vmul.f32 %v267, 0.5
    %v273 = vmul.f32 %v269, 1.442695
    %v274 = vpow.pop %v273
    %v275 = vmul.f32 %v270, 1.442695
    %v276 = vpow.pop %v275
    %v277 = vmul.f32 %v271, 1.442695
    %v278 = vpow.pop %v277
    %v279 = vmul.f32 %v272, 1.442695
    %v280 = vpow.pop %v279
    %285 = vrot.lane.b32.xlu0 %v63, 8
    %v286 = vpop.permute.xlu0 %285
    %287 = vrot.lane.b32.xlu0 %v64, 8
    %v288 = vpop.permute.xlu0 %287
    %289 = vrot.lane.b32.xlu0 %v65, 8
    %v290 = vpop.permute.xlu0 %289
    %291 = vrot.lane.b32.xlu0 %v66, 8
    %v292 = vpop.permute.xlu0 %291
    %v297 = vmul.f32 %v274, %v286
    %v298 = vmul.f32 %v276, %v288
    %v299 = vmul.f32 %v278, %v290
    %v300 = vmul.f32 %v280, %v292
    %305 = vrot.lane.b32.xlu0 %v258, 8
    %v306 = vpop.permute.xlu0 %305
    %307 = vrot.lane.b32.xlu0 %v261, 8
    %v308 = vpop.permute.xlu0 %307
    %309 = vrot.lane.b32.xlu0 %v264, 8
    %v310 = vpop.permute.xlu0 %309
    %311 = vrot.lane.b32.xlu0 %v267, 8
    %v312 = vpop.permute.xlu0 %311
    %v317 = vadd.f32 %v297, %v306
    %v318 = vadd.f32 %v298, %v308
    %v319 = vadd.f32 %v299, %v310
    %v320 = vadd.f32 %v300, %v312
    %325 = vrot.lane.b32.xlu0 %v317, 120
    %v326 = vpop.permute.xlu0 %325
    %327 = vrot.lane.b32.xlu0 %v318, 120
    %v328 = vpop.permute.xlu0 %327
    %329 = vrot.lane.b32.xlu0 %v319, 120
    %v330 = vpop.permute.xlu0 %329
    %331 = vrot.lane.b32.xlu0 %v320, 120
    %v332 = vpop.permute.xlu0 %331
    %337 = vst.msk [vmem:[%s16] sm:$0xff] %vm72, %v326
    %338 = vst.msk [vmem:[%s16 + $0x8] sm:$0xff] %vm72, %v328
    %339 = vst.msk [vmem:[%s16 + $0x10] sm:$0xff] %vm72, %v330
    %vm340 = vcmask 62464
    %341 = vst.msk [vmem:[%s16 + $0x18] sm:$0x3f] %vm340, %v332
    %v342 = vadd.f32 %v258, 1.0
    %v343 = vadd.f32 %v261, 1.0
    %v344 = vadd.f32 %v264, 1.0
    %v345 = vadd.f32 %v267, 1.0
    %v346 = vmul.f32 %v258, %v258
    %v347 = vmul.f32 %v261, %v261
    %v348 = vmul.f32 %v264, %v264
    %v349 = vmul.f32 %v267, %v267
    %354 = vrot.lane.b32.xlu0 %v346, 8
    %v355 = vpop.permute.xlu0 %354
    %356 = vrot.lane.b32.xlu0 %v347, 8
    %v357 = vpop.permute.xlu0 %356
    %358 = vrot.lane.b32.xlu0 %v348, 8
    %v359 = vpop.permute.xlu0 %358
    %360 = vrot.lane.b32.xlu0 %v349, 8
    %v361 = vpop.permute.xlu0 %360
    %v366 = vsub.f32 %v342, %v355
    %v367 = vsub.f32 %v343, %v357
    %v368 = vsub.f32 %v344, %v359
    %v369 = vsub.f32 %v345, %v361
    %v370 = vmul.f32 %v258, 1.442695
    %v371 = vpow.pop %v370
    %v372 = vmul.f32 %v261, 1.442695
    %v373 = vpow.pop %v372
    %v374 = vmul.f32 %v264, 1.442695
    %v375 = vpow.pop %v374
    %v376 = vmul.f32 %v267, 1.442695
    %v377 = vpow.pop %v376
    %v378 = vsub.f32 %v366, %v371
    %v379 = vsub.f32 %v367, %v373
    %v380 = vsub.f32 %v368, %v375
    %v381 = vsub.f32 %v369, %v377
    %386 = vrot.lane.b32.xlu0 %v378, 120
    %v387 = vpop.permute.xlu0 %386
    %388 = vrot.lane.b32.xlu0 %v379, 120
    %v389 = vpop.permute.xlu0 %388
    %390 = vrot.lane.b32.xlu0 %v380, 120
    %v391 = vpop.permute.xlu0 %390
    %392 = vrot.lane.b32.xlu0 %v381, 120
    %v393 = vpop.permute.xlu0 %392
    %v398 = vsel %vm72, %v387, 0.0
    %v399 = vsel %vm72, %v389, 0.0
    %v400 = vadd.f32 %v398, %v399
    %v401 = vsel %vm72, %v391, 0.0
    %v402 = vadd.f32 %v400, %v401
    %v403 = vsel %vm340, %v393, 0.0
    %v404 = vadd.f32 %v402, %v403
    %405 = vadd.xlane.f32.xlu0 %v404
    %v406 = vpop.xlane.xlu0 %405
    %v407 = vrot.slane %v406, 4
    %v408 = vadd.f32 %v406, %v407
    %v409 = vrot.slane %v408, 2
    %v410 = vadd.f32 %v408, %v409
    %v411 = vrot.slane %v410, 1
    %v412 = vadd.f32 %v410, %v411
    %s413 = vtos %v412
    %s414 = smul.f32 %s413, -0.5
    %s415 = smul.f32 %s414, 0.0018867925
    %s416 = scalar_lea.smem [#allocation3], 0
    %417 = sst [smem:[%s416]] %s415
    %vm418 = vcmask 1046528
    %v419 = vrot.slane %v318, 1
    %v420 = vrot.slane %v319, 1
    %v421 = vsel %vm418, %v419, %v420
    %v422 = vrot.slane %v320, 1
    %v423 = vsel %vm418, %v420, %v422
    %vm425 = vcmask 1045504
    %v426 = vsel %vm425, %v318, %v421
    %v427 = vrot.slane %v317, 1
    %v428 = vsel %vm418, %v427, %v419
    %v431 = vrot.slane %v319, 2
    %v432 = vrot.slane %v320, 2
    %v433 = vsel %vm425, %v431, %v432
    %v437 = vsel %vm425, %v419, %v431
    %439 = vrot.lane.b32.xlu0 %v426, 120
    %v440 = vpop.permute.xlu0 %439
    %441 = vrot.lane.b32.xlu0 %v423, 120
    %v442 = vpop.permute.xlu0 %441
    %443 = vrot.lane.b32.xlu0 %v422, 120
    %v444 = vpop.permute.xlu0 %443
    %v448 = vsel %vm72, %v326, %v428
    %v449 = vsel %vm72, %v440, %v437
    %v450 = vsel %vm72, %v442, %v433
    %v451 = vsel %vm72, %v444, %v432
    %v452 = vld [vmem:[%s10] sm:$0xff]
    %v453 = vld [vmem:[%s10 + $0x8] sm:$0xff]
    %v454 = vld [vmem:[%s11] sm:$0x1]
    %v456 = vperm.slane %v454, 0
    %v459 = vsel %vm227, %v448, 0
    %v462 = vsel %vm227, %v449, 0
    %v465 = vsel %vm227, %v450, 0
    %v468 = vsel %vm227, %v451, 0
    %470 = vmatpush.msra.mxu0 0.0
    %471 = vmatpush.msra.mxu0 0.0
    %472 = vmatpush.msra.mxu0 0.0
    %473 = vmatpush.msra.mxu0 0.0
    %474 = vmatpush.msra.mxu0 0.0
    %475 = vmatpush.msra.mxu0 0.0
    %476 = vmatpush.msra.mxu0 0.0
    %477 = vmatpush.msra.mxu0 0.0
    %478 = vmatpush.msra.mxu0 0.0
    %479 = vmatpush.msra.mxu0 0.0
    %480 = vmatpush.msra.mxu0 0.0
    %481 = vmatpush.msra.mxu0 0.0
    %482 = vmatpush.msra.mxu0 0.0
    %483 = vmatpush.msra.mxu0 0.0
    %484 = vmatpush.msra.mxu0 %v453
    %485 = vmatpush.msra.mxu0 %v452
    %486 = vmatmul.f32.gmra.mxu0 %v459
    %v487 = vpop.f32.mrf.mxu0
    %v488 = vadd.f32 %v456, %v487
    %489 = vmatmul.f32.gmra.mxu0 %v462
    %v490 = vpop.f32.mrf.mxu0
    %v491 = vadd.f32 %v456, %v490
    %492 = vmatmul.f32.gmra.mxu0 %v465
    %v493 = vpop.f32.mrf.mxu0
    %v494 = vadd.f32 %v456, %v493
    %495 = vmatmul.f32.gmra.mxu0 %v468
    %v496 = vpop.f32.mrf.mxu0
    %v497 = vadd.f32 %v456, %v496
    %498 = vdwg.mxu0
    %v499 = vmax.f32 %v488, 0.0
    %v500 = vmax.f32 %v491, 0.0
    %v501 = vmax.f32 %v494, 0.0
    %v502 = vmax.f32 %v497, 0.0
    %v503 = vld [vmem:[%s12] sm:$0xff]
    %v504 = vld [vmem:[%s12 + $0x8] sm:$0xff]
    %v505 = vld [vmem:[%s12 + $0x10] sm:$0xff]
    %v506 = vld [vmem:[%s12 + $0x18] sm:$0xff]
    %v507 = vld [vmem:[%s13] sm:$0x1]
    %v509 = vperm.slane %v507, 0
    %v512 = vsel %vm126, %v499, 0
    %v515 = vsel %vm126, %v500, 0
    %v518 = vsel %vm126, %v501, 0
    %v521 = vsel %vm126, %v502, 0
    %523 = vmatpush.msra.mxu0 0.0
    %524 = vmatpush.msra.mxu0 0.0
    %525 = vmatpush.msra.mxu0 0.0
    %526 = vmatpush.msra.mxu0 0.0
    %527 = vmatpush.msra.mxu0 0.0
    %528 = vmatpush.msra.mxu0 0.0
    %529 = vmatpush.msra.mxu0 0.0
    %530 = vmatpush.msra.mxu0 0.0
    %531 = vmatpush.msra.mxu0 0.0
    %532 = vmatpush.msra.mxu0 0.0
    %533 = vmatpush.msra.mxu0 0.0
    %534 = vmatpush.msra.mxu0 0.0
    %535 = vmatpush.msra.mxu0 %v506
    %536 = vmatpush.msra.mxu0 %v505
    %537 = vmatpush.msra.mxu0 %v504
    %538 = vmatpush.msra.mxu0 %v503
    %539 = vmatmul.f32.gmra.mxu0 %v512
    %v540 = vpop.f32.mrf.mxu0
    %v541 = vadd.f32 %v509, %v540
    %542 = vmatmul.f32.gmra.mxu0 %v515
    %v543 = vpop.f32.mrf.mxu0
    %v544 = vadd.f32 %v509, %v543
    %545 = vmatmul.f32.gmra.mxu0 %v518
    %v546 = vpop.f32.mrf.mxu0
    %v547 = vadd.f32 %v509, %v546
    %548 = vmatmul.f32.gmra.mxu0 %v521
    %v549 = vpop.f32.mrf.mxu0
    %v550 = vadd.f32 %v509, %v549
    %551 = vdwg.mxu0
    %v552 = vmax.f32 %v541, 0.0
    %v553 = vmax.f32 %v544, 0.0
    %v554 = vmax.f32 %v547, 0.0
    %v555 = vmax.f32 %v550, 0.0
    %v556 = vld [vmem:[%s14] sm:$0xff]
    %v557 = vld [vmem:[%s14 + $0x8] sm:$0xff]
    %v558 = vld [vmem:[%s14 + $0x10] sm:$0xff]
    %v559 = vld [vmem:[%s14 + $0x18] sm:$0xff]
    %v560 = vld [vmem:[#allocation2] sm:$0x1]
    %v562 = vsel %vm126, %v552, 0
    %v565 = vsel %vm126, %v553, 0
    %v568 = vsel %vm126, %v554, 0
    %v571 = vsel %vm126, %v555, 0
    %573 = vmatpush.msra.mxu0 0.0
    %574 = vmatpush.msra.mxu0 0.0
    %575 = vmatpush.msra.mxu0 0.0
    %576 = vmatpush.msra.mxu0 0.0
    %577 = vmatpush.msra.mxu0 0.0
    %578 = vmatpush.msra.mxu0 0.0
    %579 = vmatpush.msra.mxu0 0.0
    %580 = vmatpush.msra.mxu0 0.0
    %581 = vmatpush.msra.mxu0 0.0
    %582 = vmatpush.msra.mxu0 0.0
    %583 = vmatpush.msra.mxu0 0.0
    %584 = vmatpush.msra.mxu0 0.0
    %585 = vmatpush.msra.mxu0 %v559
    %586 = vmatpush.msra.mxu0 %v558
    %587 = vmatpush.msra.mxu0 %v557
    %588 = vmatpush.msra.mxu0 %v556
    %589 = vmatmul.f32.gmra.mxu0 %v562
    %v590 = vpop.f32.mrf.mxu0
    %v591 = vadd.f32 0.0, %v590
    %592 = vmatmul.f32.gmra.mxu0 %v565
    %v593 = vpop.f32.mrf.mxu0
    %v594 = vadd.f32 0.0, %v593
    %595 = vmatmul.f32.gmra.mxu0 %v568
    %v596 = vpop.f32.mrf.mxu0
    %v597 = vadd.f32 0.0, %v596
    %598 = vmatmul.f32.gmra.mxu0 %v571
    %v599 = vpop.f32.mrf.mxu0
    %v600 = vadd.f32 0.0, %v599
    %601 = vdwg.mxu0
    %v604 = vrot.slane %v591, 1
    %v605 = vrot.slane %v594, 1
    %v606 = vsel %vm418, %v604, %v605
    %v611 = vrot.slane %v594, 2
    %v612 = vrot.slane %v597, 2
    %v613 = vsel %vm425, %v611, %v612
    %v614 = vrot.slane %v600, 2
    %v615 = vsel %vm425, %v612, %v614
    %vm619 = vcmask 1044480
    %v620 = vsel %vm619, %v605, %v613
    %v621 = vrot.slane %v597, 1
    %v622 = vsel %vm418, %v605, %v621
    %v623 = vrot.slane %v600, 1
    %v624 = vsel %vm418, %v621, %v623
    %v626 = vsel %vm619, %v594, %v622
    %628 = vrot.lane.b32.xlu0 %v591, 124
    %v629 = vpop.permute.xlu0 %628
    %630 = vrot.lane.b32.xlu0 %v626, 124
    %v631 = vpop.permute.xlu0 %630
    %632 = vrot.lane.b32.xlu0 %v624, 124
    %v633 = vpop.permute.xlu0 %632
    %634 = vrot.lane.b32.xlu0 %v623, 124
    %v635 = vpop.permute.xlu0 %634
    %v640 = vadd.f32 %v606, %v629
    %v641 = vadd.f32 %v620, %v631
    %v642 = vadd.f32 %v615, %v633
    %v643 = vadd.f32 %v614, %v635
    %v645 = vperm.slane %v560, 0
    %646 = vset.pattern.permute.xlu0 0
    %647 = vperm.xlu0 %646, %v645
    %v648 = vpop.permute.xlu0 %647
    %v650 = vadd.f32 %v640, %v648
    %v651 = vadd.f32 %v641, %v648
    %v652 = vadd.f32 %v642, %v648
    %v653 = vadd.f32 %v643, %v648
    %vm654 = vcmask 31744
    %655 = vst.msk [vmem:[%s17] sm:$0xff] %vm654, %v650
    %656 = vst.msk [vmem:[%s17 + $0x8] sm:$0xff] %vm654, %v651
    %657 = vst.msk [vmem:[%s17 + $0x10] sm:$0xff] %vm654, %v652
    %vm658 = vcmask 25600
    %659 = vst.msk [vmem:[%s17 + $0x18] sm:$0x3] %vm658, %v653
    // Predicated region
    $region66: #{conv_vae_forward.1} parent=1 // pred_check
      _
    $region67: #{conv_vae_forward.1} parent=1 // pred_check_branch
      %661 = sbr.rel (0) target = $region69
    $region68: #{conv_vae_forward.1} parent=1 // pred_region
      _
    $region69: #{conv_vae_forward.1} parent=1 // pred_fallthru
      _
    // Predicated region
    $region70: #{conv_vae_forward.1} parent=1 // pred_check
      _
    $region71: #{conv_vae_forward.1} parent=1 // pred_check_branch
      %663 = sbr.rel (0) target = $region73
    $region72: #{conv_vae_forward.1} parent=1 // pred_region
      _
    $region73: #{conv_vae_forward.1} parent=1 // pred_fallthru
      _
    // Predicated region
    $region74: #{conv_vae_forward.1} parent=1 // pred_check
      _
    $region75: #{conv_vae_forward.1} parent=1 // pred_check_branch
      %665 = sbr.rel (0) target = $region77
    $region76: #{conv_vae_forward.1} parent=1 // pred_region
      %667 = vsyncadd [#allocation4], 0
      %s669 = sshll.u32 %s18, 4
      %s670 = int_to_ptr.hbm [resolvable:$true] %s669
      %672 = dma.smem_to_hbm [#allocation3], 16, %s670, [#allocation4]
    $region77: #{conv_vae_forward.1} parent=1 // pred_fallthru
      _
    // Predicated region
    $region78: #{conv_vae_forward.1} parent=1 // pred_check
      _
    $region79: #{conv_vae_forward.1} parent=1 // pred_check_branch
      %674 = sbr.rel (0) target = $region81
    $region80: #{conv_vae_forward.1} parent=1 // pred_region
      _
    $region81: #{conv_vae_forward.1} parent=1 // pred_fallthru
      _
    // Predicated region
    $region82: #{conv_vae_forward.1} parent=1 // pred_check
      _
    $region83: #{conv_vae_forward.1} parent=1 // pred_check_branch
      %676 = sbr.rel (0) target = $region85
    $region84: #{conv_vae_forward.1} parent=1 // pred_region
      _
    $region85: #{conv_vae_forward.1} parent=1 // pred_fallthru
      _
    // Predicated region
    $region86: #{conv_vae_forward.1} parent=1 // pred_check
      _
    $region87: #{conv_vae_forward.1} parent=1 // pred_check_branch
      %678 = sbr.rel (0) target = $region89
    $region88: #{conv_vae_forward.1} parent=1 // pred_region
      %680 = dma.done [#allocation4], 16
    $region89: #{conv_vae_forward.1} parent=1 // pred_fallthru
      _
    %681 = sfence
    %682 = vsyncpa [#allocation4], 1

</llo_original>
